<compile_context>
chip_gen: v6e
topology: v6e:2x2x1
jax: 0.10.0
libtpu: 0.0.40
codegen_flags: <defaults>
</compile_context>

<pallas_src>
import math

import jax
import jax.numpy as jnp
from jax.experimental import pallas as pl
from jax.experimental.pallas import tpu as pltpu


def _build_pe(context_window: int, embedding_size: int) -> jnp.ndarray:
    """Deterministic sinusoidal positional-encoding table, shape (L, 1, E)."""
    position = jnp.arange(context_window, dtype=jnp.float32)[:, None]          # (L, 1)
    div_term = jnp.exp(
        jnp.arange(0, embedding_size, 2, dtype=jnp.float32)
        * -(math.log(10000.0) / embedding_size)
    )                                                                           # (E/2,)
    angles = position * div_term                                                # (L, E/2)
    pe = jnp.zeros((context_window, embedding_size), dtype=jnp.float32)
    pe = pe.at[:, 0::2].set(jnp.sin(angles))
    pe = pe.at[:, 1::2].set(jnp.cos(angles))
    return pe[:, None, :]                                                       # (L, 1, E)


def init_positional_encoding(embedding_size: int, context_window: int = 512,
                             dtype=jnp.float32):
    """Build the PyTorch-style (L,1,E) buffer and the cached (L,E) kernel table.

    The (L, E) table is cast to the activation dtype ONCE here so the forward
    pass never re-runs a slice/cast pass over HBM.
    """
    pe = _build_pe(context_window, embedding_size)                              # (L, 1, E) f32
    pe_table = pe.reshape(context_window, embedding_size).astype(dtype)         # (L, E)
    return pe, pe_table


def _make_pe_add_kernel(num_batches: int, emb: int):
    """out = x + pe broadcast over batch, on lane-dense row tiles.

    x_ref / o_ref: (TILE_S, num_batches * emb)
    pe_ref       : (TILE_S, emb)   -- DMA'd once per row tile
    """
    single_store = (emb % 128 != 0) or num_batches == 1

    def kernel(x_ref, pe_ref, o_ref):
        pe_blk = pe_ref[...]
        if single_store:
            # One full-width lane-dense store (avoids masked vst.msk partial
            # stores when emb is not a multiple of 128).
            if num_batches > 1:
                pe_blk = jnp.concatenate([pe_blk] * num_batches, axis=1)
            o_ref[...] = x_ref[...] + pe_blk
        else:
            # emb is a 128 multiple: every per-batch slice is already an
            # aligned, unmasked store, and we skip the in-VMEM widen of pe.
            for b in range(num_batches):
                lo = b * emb
                o_ref[:, lo:lo + emb] = x_ref[:, lo:lo + emb] + pe_blk

    return kernel


def positional_encoding_forward(x: jnp.ndarray, pe_table: jnp.ndarray,
                                block_rows=None) -> jnp.ndarray:
    """Eval-mode PositionalEncoding forward: x + pe[:S] (dropout = identity).

    x:        (S, B, E) activations, seq-first like the PyTorch module.
    pe_table: (L, E)    full-length table, pre-cast to x.dtype at init.
    """
    S, B, E = x.shape
    L, Ep = pe_table.shape
    if Ep != E:
        raise ValueError(f"pe table embedding dim {Ep} != x embedding dim {E}")
    if S > L:
        raise ValueError(f"sequence length {S} exceeds context_window {L}")
    if pe_table.dtype != x.dtype:
        # Fallback only — prefer casting once at init (init_positional_encoding).
        pe_table = pe_table.astype(x.dtype)

    x2d = x.reshape(S, B * E)            # free: collapses contiguous trailing dims
    itemsize = jnp.dtype(x.dtype).itemsize

    # Generation-aware single-buffered per-step VMEM budget.  v7x: 64 MiB/core,
    # v5e/v6e: 128 MiB.  Double-buffered (x + pe + out) stays <= ~3x budget,
    # well under the 32 MiB scoped limit everywhere; bigger tiles buy nothing
    # past ~512 rows (HBM roofline plateau).
    try:
        vmem_cap = int(pltpu.get_tpu_info().vmem_capacity_bytes)
    except Exception:                     # info unavailable -> assume smallest (v7x)
        vmem_cap = 64 * 1024 * 1024
    budget = max(1 << 20, min(8 * 1024 * 1024, vmem_cap // 8))

    # Sublane packing alignment: 8 rows f32, 16 bf16, 32 int8/fp8.
    row_align = 8 * max(1, 4 // itemsize)

    # Column (whole-batch) tiling only if even a minimal row tile overflows the
    # budget (extreme B*E).  Requires E % 128 == 0 to keep blocks layout-legal.
    cb = B
    if row_align * (2 * B * E + E) * itemsize > budget and E % 128 == 0:
        per_batch = 2 * E * itemsize * row_align
        cb = int(max(1, min(B, (budget - row_align * E * itemsize) // per_batch)))
    col_tiles = pl.cdiv(B, cb)
    width = cb * E

    bytes_per_row = (2 * width + E) * itemsize
    if block_rows is None:
        block_rows = max(row_align, budget // bytes_per_row)
        # v7x megacore: keep >= 4 row tiles (when S allows) so the parallel row
        # axis is actually split across both TensorCores (no-op on v5e/v6e).
        if S >= 4 * row_align:
            cap = max(row_align, (S // 4) // row_align * row_align)
            block_rows = min(block_rows, cap)
    block_rows = min(int(block_rows), S)
    if block_rows % row_align != 0:
        # Round down (stays inside budget); round up to a single padded block
        # when S itself is smaller than the sublane alignment.
        block_rows = max(row_align, (block_rows // row_align) * row_align)

    row_tiles = pl.cdiv(S, block_rows)
    kernel = _make_pe_add_kernel(cb, E)

    if col_tiles == 1:
        grid = (row_tiles,)
        x_spec = pl.BlockSpec((block_rows, width), lambda i: (i, 0))
        pe_spec = pl.BlockSpec((block_rows, E), lambda i: (i, 0))
        out_spec = pl.BlockSpec((block_rows, width), lambda i: (i, 0))
        semantics = (pltpu.PARALLEL,)
    else:
        grid = (row_tiles, col_tiles)
        x_spec = pl.BlockSpec((block_rows, width), lambda i, j: (i, j))
        pe_spec = pl.BlockSpec((block_rows, E), lambda i, j: (i, 0))
        out_spec = pl.BlockSpec((block_rows, width), lambda i, j: (i, j))
        semantics = (pltpu.PARALLEL, pltpu.PARALLEL)

    out2d = pl.pallas_call(
        kernel,
        out_shape=jax.ShapeDtypeStruct((S, B * E), x.dtype),
        grid=grid,
        in_specs=[x_spec, pe_spec],
        out_specs=out_spec,
        compiler_params=pltpu.CompilerParams(
            dimension_semantics=semantics,
            vmem_limit_bytes=32 * 1024 * 1024,
        ),
    )(x2d, pe_table)

    return out2d.reshape(S, B, E)


if __name__ == "__main__":
    key = jax.random.PRNGKey(0)
    k1, k2 = jax.random.split(key)

    # Case 1: small shapes consistent with the module (seq-first layout).
    embedding_size = 32
    context_window = 512
    seq_len = 8
    batch = 2

    x = jax.random.normal(k1, (seq_len, batch, embedding_size), dtype=jnp.float32)
    pe_buf, pe_table = init_positional_encoding(embedding_size, context_window,
                                                dtype=x.dtype)

    out = jax.block_until_ready(positional_encoding_forward(x, pe_table))
    ref = x + pe_buf[:seq_len]
    assert out.shape == (seq_len, batch, embedding_size)
    assert jnp.allclose(out, ref, atol=1e-6), "mismatch vs reference (small case)"

    # Case 2: exercise the tiled, pipelined grid (>= 4 lane-dense row tiles).
    S2, B2, E2 = 256, 2, 128
    x2 = jax.random.normal(k2, (S2, B2, E2), dtype=jnp.float32)
    pe_buf2, pe_table2 = init_positional_encoding(E2, 512, dtype=x2.dtype)
    out2 = jax.block_until_ready(
        positional_encoding_forward(x2, pe_table2, block_rows=64))
    ref2 = x2 + pe_buf2[:S2]
    assert jnp.allclose(out2, ref2, atol=1e-6), "mismatch vs reference (tiled case)"

    print("KERNEL_OK")
</pallas_src>

<mosaic_0001>
module attributes {stable_mosaic.version = 11 : i64} {
  func.func @kernel(%arg0: i32, %arg1: memref<8x64xf32, #tpu.memory_space<vmem>>, %arg2: memref<8x32xf32, #tpu.memory_space<vmem>>, %arg3: memref<8x64xf32, #tpu.memory_space<vmem>>) attributes {dimension_semantics = [#tpu.dimension_semantics<parallel>], iteration_bounds = array<i64: 1>, scalar_prefetch = 0 : i64, scratch_operands = 0 : i64, tpu.core_type = #tpu.core_type<tc>, window_params = [{transform_indices = @transform_0, window_bounds = array<i64: 8, 64>}, {transform_indices = @transform_1, window_bounds = array<i64: 8, 32>}, {transform_indices = @transform_2, window_bounds = array<i64: 8, 64>}]} {
    %c0 = arith.constant 0 : index
    %c0_0 = arith.constant 0 : index
    %0 = vector.load %arg2[%c0, %c0_0] : memref<8x32xf32, #tpu.memory_space<vmem>>, vector<8x32xf32>
    %1 = tpu.concatenate %0, %0 in 1 : vector<8x32xf32>, vector<8x32xf32> -> vector<8x64xf32>
    %c0_1 = arith.constant 0 : index
    %c0_2 = arith.constant 0 : index
    %2 = vector.load %arg1[%c0_1, %c0_2] : memref<8x64xf32, #tpu.memory_space<vmem>>, vector<8x64xf32>
    %3 = arith.addf %2, %1 : vector<8x64xf32>
    %c0_3 = arith.constant 0 : index
    %c0_4 = arith.constant 0 : index
    %4 = vector.load %arg3[%c0_3, %c0_4] : memref<8x64xf32, #tpu.memory_space<vmem>>, vector<8x64xf32>
    tpu.vector_store %arg3[%c0_3, %c0_4], %3 {strides = array<i32>} : memref<8x64xf32, #tpu.memory_space<vmem>>, vector<8x64xf32>,
    return
  }
  func.func @transform_0(%arg0: i32) -> (i32, i32) {
    %c0_i32 = arith.constant 0 : i32
    %c0_i32_0 = arith.constant 0 : i32
    return %arg0, %c0_i32 : i32, i32
  }
  func.func @transform_1(%arg0: i32) -> (i32, i32) {
    %c0_i32 = arith.constant 0 : i32
    %c0_i32_0 = arith.constant 0 : i32
    return %arg0, %c0_i32 : i32, i32
  }
  func.func @transform_2(%arg0: i32) -> (i32, i32) {
    %c0_i32 = arith.constant 0 : i32
    %c0_i32_0 = arith.constant 0 : i32
    return %arg0, %c0_i32 : i32, i32
  }
}

</mosaic_0001>

<llo_original>
// kernel: tpu_custom_call.1
$region0: #{tpu_custom_call.1}
  #allocation0 [shape = 'u32[]', space=smem, size = 0x4, offset = 0x4, fixed_abs, tag = 'smem constant byte address 0x4 - core index']
  #allocation1 [shape = 'u32[144,128]{1,0:T(1,128)}', space=vmem, size = 0x12000, scoped, tag = 'internal scratch']
  %s0 = inlined_call_operand.vmem [shape: f32[8,64], index: 0, kind: input, shape index: {}]
  %s1 = inlined_call_operand.vmem [shape: f32[512,32], index: 1, kind: input, shape index: {}]
  %s2 = inlined_call_operand.hbm [shape: f32[8,64], index: 2, kind: output, shape index: {}]
  %s3 = sld [smem:[#allocation0]]
  $region18: #{tpu_custom_call.1} parent=0
    _
  %s5 = ssub.s32 1, %s3
  %s6 = scalar_select 0, %s5, %s3
  $region1: #{tpu_custom_call.1} parent=0
    #allocation2 [shape = 'u8[4096]{0}', space=vmem, size = 0x1000, scoped, tag = 'output window, operand 0, single buffered']
    #allocation3 [shape = 's32[1]{0}', space=sflag, size = 0x4, scoped, tag = 'scoped memory for tpu_custom_call.1']
    %7 = vsyncpa [#allocation3], 0
    // Predicated region
    $region2: #{tpu_custom_call.1} parent=1 // pred_check
      _
    $region3: #{tpu_custom_call.1} parent=1 // pred_check_branch
      %9 = sbr.rel (0) target = $region5
    $region4: #{tpu_custom_call.1} parent=1 // pred_region
      _
    $region5: #{tpu_custom_call.1} parent=1 // pred_fallthru
      _
    // Predicated region
    $region6: #{tpu_custom_call.1} parent=1 // pred_check
      _
    $region7: #{tpu_custom_call.1} parent=1 // pred_check_branch
      %11 = sbr.rel (0) target = $region9
    $region8: #{tpu_custom_call.1} parent=1 // pred_region
      _
    $region9: #{tpu_custom_call.1} parent=1 // pred_fallthru
      _
    %v12 = vld [vmem:[%s1] sm:$0xff]
    %14 = vrot.lane.b32.xlu0 %v12, 32
    %v15 = vpop.permute.xlu0 %14
    %vm17 = vcmask 261120
    %v18 = vsel %vm17, %v12, %v15
    %v19 = vld [vmem:[%s0] sm:$0xff]
    %v20 = vadd.f32 %v19, %v18
    %vm21 = vcmask 523264
    %22 = vst.msk [vmem:[#allocation2] sm:$0xff] %vm21, %v20
    // Predicated region
    $region10: #{tpu_custom_call.1} parent=1 // pred_check
      _
    $region11: #{tpu_custom_call.1} parent=1 // pred_check_branch
      %24 = sbr.rel (0) target = $region13
    $region12: #{tpu_custom_call.1} parent=1 // pred_region
      %s26 = ssub.s32 128, 128
      %27 = vsyncadd [#allocation3], %s26
      %s29 = sshll.u32 [#allocation2], 4
      %s30 = int_to_ptr.vmem [resolvable:$true] %s29
      %32 = dma.vmem_to_hbm [thread:$0]  %s30, 128, %s2, [#allocation3]
    $region13: #{tpu_custom_call.1} parent=1 // pred_fallthru
      _
    // Predicated region
    $region14: #{tpu_custom_call.1} parent=1 // pred_check
      _
    $region15: #{tpu_custom_call.1} parent=1 // pred_check_branch
      %34 = sbr.rel (0) target = $region17
    $region16: #{tpu_custom_call.1} parent=1 // pred_region
      %35 = dma.done [#allocation3], 128
    $region17: #{tpu_custom_call.1} parent=1 // pred_fallthru
      _
    %36 = vsyncpa [#allocation3], 1

</llo_original>
